<compile_context>
chip_gen: v5e
topology: v5e:2x2
jax: 0.10.0
libtpu: 0.0.40
codegen_flags: <defaults>
</compile_context>

<pallas_src>
import functools

import jax
import jax.numpy as jnp
from jax.experimental import pallas as pl
from jax.experimental.pallas import tpu as pltpu

_EPS = 1e-5
_MIN_GRID_STEPS = 4  # >= 2 per v7x TensorCore, and >= 2 so the pipeline overlaps


def _round_up(x, m):
    return ((x + m - 1) // m) * m


def _cdiv(a, b):
    return (a + b - 1) // b


def _vmem_budget_and_limit():
    """Per-generation block-buffer budget + scoped-VMEM limit.

    v7x has 64 MiB VMEM per TensorCore; v5e/v6e have 128 MiB.  The budget is an
    honest per-tile footprint (I/O double-buffers + f32 temps, see _tile_elems),
    not just I/O bytes.
    """
    cap = None
    try:
        cap = getattr(pltpu.get_tpu_info(), "vmem_capacity_bytes", None)
    except Exception:
        cap = None
    if not cap:
        cap = 64 * 1024 * 1024  # conservative fallback: assume v7x per-core VMEM
    budget = min(cap // 4, 32 * 1024 * 1024)        # 16 MiB on v7x, 32 MiB on v5e/v6e
    limit = min((cap * 3) // 4, 96 * 1024 * 1024)   # 48 MiB on v7x, 96 MiB on v5e/v6e
    return budget, limit


def _tile_elems(budget_bytes, in_dtype, out_dtype):
    # Per element: double-buffered input + double-buffered output + ~2 full-tile
    # f32 compute temporaries (x upcast to f32 plus one live intermediate).
    per_elem = (2 * jnp.dtype(in_dtype).itemsize
                + 2 * jnp.dtype(out_dtype).itemsize
                + 2 * 4)
    return max(1, budget_bytes // per_elem)


def _cap_tile_for_grid(tile, extent, granule, other_steps):
    """Shrink `tile` (a multiple of `granule`) so the total grid has at least
    _MIN_GRID_STEPS steps whenever `extent` allows it."""
    if other_steps * _cdiv(extent, tile) >= _MIN_GRID_STEPS:
        return tile
    want_splits = _cdiv(_MIN_GRID_STEPS, max(other_steps, 1))
    splits = min(want_splits, _cdiv(extent, granule))
    return min(tile, _round_up(_cdiv(extent, splits), granule))


# ---------------------------------------------------------------------------
# Fused NCHW path: normalize over channels (sublanes), spatial on lanes.
# ---------------------------------------------------------------------------
def _ln_channels_kernel(x_ref, w_ref, b_ref, o_ref):
    # x_ref: (C, TILE_HW)  channels on sublanes, spatial lane-dense.
    # Single-pass moments so only the f32 x stays live (no xc temporary).
    x = x_ref[...].astype(jnp.float32)
    inv_c = 1.0 / x.shape[0]
    mu = jnp.sum(x, axis=0, keepdims=True) * inv_c
    var = jnp.maximum(jnp.sum(x * x, axis=0, keepdims=True) * inv_c - mu * mu, 0.0)
    inv = jax.lax.rsqrt(var + _EPS)
    w = w_ref[...].astype(jnp.float32)
    b = b_ref[...].astype(jnp.float32)
    o_ref[...] = ((x - mu) * inv * w + b).astype(o_ref.dtype)


def withbias_layernorm_nchw(x_nchw, weight, bias, *, tile_hw=None):
    """Fused to_3d -> WithBias_LayerNorm -> to_4d on an NCHW tensor."""
    B, C, H, W = x_nchw.shape
    HW = H * W
    x3 = x_nchw.reshape(B, C, HW)  # free reshape, no data movement

    budget, vmem_limit = _vmem_budget_and_limit()
    hw_padded = _round_up(HW, 128)
    if tile_hw is None:
        tile_hw = max(128, (_tile_elems(budget, x_nchw.dtype, x_nchw.dtype) // C) // 128 * 128)
    tile_hw = min(_round_up(tile_hw, 128), hw_padded)
    tile_hw = _cap_tile_for_grid(tile_hw, HW, 128, other_steps=B)

    w2 = weight.reshape(C, 1)
    b2 = bias.reshape(C, 1)

    grid = (B, _cdiv(HW, tile_hw))  # masked edge block if HW % tile_hw != 0
    out3 = pl.pallas_call(
        _ln_channels_kernel,
        out_shape=jax.ShapeDtypeStruct((B, C, HW), x_nchw.dtype),
        grid_spec=pltpu.PrefetchScalarGridSpec(
            num_scalar_prefetch=0,
            grid=grid,
            in_specs=[
                pl.BlockSpec((pl.Squeezed(), C, tile_hw), lambda b, s: (b, 0, s)),
                pl.BlockSpec((C, 1), lambda b, s: (0, 0)),
                pl.BlockSpec((C, 1), lambda b, s: (0, 0)),
            ],
            out_specs=pl.BlockSpec((pl.Squeezed(), C, tile_hw), lambda b, s: (b, 0, s)),
        ),
        compiler_params=pltpu.CompilerParams(
            dimension_semantics=("parallel", "parallel"),
            vmem_limit_bytes=vmem_limit,
        ),
    )(x3, w2, b2)
    return out3.reshape(B, C, H, W)


# ---------------------------------------------------------------------------
# Generic last-dim path (raw module semantics for any (..., C) input).
# ---------------------------------------------------------------------------
def _ln_rows_kernel(x_ref, w_ref, b_ref, o_ref):
    # x_ref: (TILE_ROWS, C), w_ref/b_ref: (1, C).  Single-pass moments.
    x = x_ref[...].astype(jnp.float32)
    inv_c = 1.0 / x.shape[1]
    mu = jnp.sum(x, axis=-1, keepdims=True) * inv_c
    var = jnp.maximum(jnp.sum(x * x, axis=-1, keepdims=True) * inv_c - mu * mu, 0.0)
    inv = jax.lax.rsqrt(var + _EPS)
    w = w_ref[...].astype(jnp.float32)
    b = b_ref[...].astype(jnp.float32)
    o_ref[...] = ((x - mu) * inv * w + b).astype(o_ref.dtype)


def _ln_rows_packed_kernel(x_ref, w_ref, b_ref, o_ref, *, c):
    # x_ref: (TILE_G, 128); each 128-lane row packs 128//c complete feature rows.
    # Segmented (per group of c lanes) sums are computed as an MXU dot against a
    # block-diagonal ones matrix, which also broadcasts the group sum back to
    # every lane of the group -> fully lane-dense loads/stores, no masked vst,
    # and the reduction rides the otherwise idle MXU.
    x = x_ref[...].astype(jnp.float32)
    gi = jax.lax.broadcasted_iota(jnp.int32, (128, 128), 0) // c
    gj = jax.lax.broadcasted_iota(jnp.int32, (128, 128), 1) // c
    seg = (gi == gj).astype(jnp.float32)
    inv_c = 1.0 / c
    mu = jnp.dot(x, seg, preferred_element_type=jnp.float32,
                 precision=jax.lax.Precision.HIGHEST) * inv_c
    ex2 = jnp.dot(x * x, seg, preferred_element_type=jnp.float32,
                  precision=jax.lax.Precision.HIGHEST) * inv_c
    var = jnp.maximum(ex2 - mu * mu, 0.0)
    inv = jax.lax.rsqrt(var + _EPS)
    w = w_ref[...].astype(jnp.float32)
    b = b_ref[...].astype(jnp.float32)
    o_ref[...] = ((x - mu) * inv * w + b).astype(o_ref.dtype)


def withbias_layernorm(x, weight, bias, *, tile_rows=None):
    """WithBias_LayerNorm over the last dim of an arbitrary-shaped tensor."""
    orig_shape = x.shape
    C = orig_shape[-1]
    rows = 1
    for d in orig_shape[:-1]:
        rows *= d

    budget, vmem_limit = _vmem_budget_and_limit()
    elems = _tile_elems(budget, x.dtype, x.dtype)

    # Lane-dense packed path for small C (C divides 128, rows pack evenly).
    use_packed = (tile_rows is None and 0 < C < 128 and 128 % C == 0
                  and (rows * C) % 128 == 0 and rows * C >= 128)
    if use_packed:
        k = 128 // C
        G = (rows * C) // 128
        xg = x.reshape(G, 128)                                   # free reshape
        wg = jnp.tile(weight.reshape(-1), (k,)).reshape(1, 128)
        bg = jnp.tile(bias.reshape(-1), (k,)).reshape(1, 128)

        tile_g = max(8, (elems // 128) // 8 * 8)
        tile_g = min(tile_g, _round_up(G, 8))
        tile_g = _cap_tile_for_grid(tile_g, G, 8, other_steps=1)

        grid = (_cdiv(G, tile_g),)
        yg = pl.pallas_call(
            functools.partial(_ln_rows_packed_kernel, c=C),
            out_shape=jax.ShapeDtypeStruct((G, 128), x.dtype),
            grid_spec=pltpu.PrefetchScalarGridSpec(
                num_scalar_prefetch=0,
                grid=grid,
                in_specs=[
                    pl.BlockSpec((tile_g, 128), lambda i: (i, 0)),
                    pl.BlockSpec((1, 128), lambda i: (0, 0)),
                    pl.BlockSpec((1, 128), lambda i: (0, 0)),
                ],
                out_specs=pl.BlockSpec((tile_g, 128), lambda i: (i, 0)),
            ),
            compiler_params=pltpu.CompilerParams(
                dimension_semantics=("parallel",),
                vmem_limit_bytes=vmem_limit,
            ),
        )(xg, wg, bg)
        return yg.reshape(orig_shape)

    # Fallback: (tile_rows, C) blocks; last dim equals the full array dim so any
    # C is legal (lane-sparse when C < 128 and does not divide 128).
    x2 = x.reshape(rows, C)
    rows_padded = _round_up(rows, 8)
    if tile_rows is None:
        tile_rows = max(8, (elems // C) // 8 * 8)
    tile_rows = min(_round_up(tile_rows, 8), rows_padded)
    tile_rows = _cap_tile_for_grid(tile_rows, rows, 8, other_steps=1)

    w2 = weight.reshape(1, C)
    b2 = bias.reshape(1, C)
    grid = (_cdiv(rows, tile_rows),)  # masked edge block handles ragged rows
    y2 = pl.pallas_call(
        _ln_rows_kernel,
        out_shape=jax.ShapeDtypeStruct((rows, C), x.dtype),
        grid_spec=pltpu.PrefetchScalarGridSpec(
            num_scalar_prefetch=0,
            grid=grid,
            in_specs=[
                pl.BlockSpec((tile_rows, C), lambda i: (i, 0)),
                pl.BlockSpec((1, C), lambda i: (0, 0)),
                pl.BlockSpec((1, C), lambda i: (0, 0)),
            ],
            out_specs=pl.BlockSpec((tile_rows, C), lambda i: (i, 0)),
        ),
        compiler_params=pltpu.CompilerParams(
            dimension_semantics=("parallel",),
            vmem_limit_bytes=vmem_limit,
        ),
    )(x2, w2, b2)
    return y2.reshape(orig_shape)


# ---------------------------------------------------------------------------
# Reference + tests
# ---------------------------------------------------------------------------
def _ref_layernorm_lastdim(x, w, b):
    mu = jnp.mean(x, axis=-1, keepdims=True)
    var = jnp.mean((x - mu) ** 2, axis=-1, keepdims=True)
    return (x - mu) / jnp.sqrt(var + _EPS) * w + b


if __name__ == "__main__":
    key = jax.random.PRNGKey(0)
    kx, kw, kb, kx2, kx3, kx4, kx5 = jax.random.split(key, 7)

    B, C, H, W = 2, 32, 16, 16
    x = jax.random.normal(kx, (B, C, H, W), dtype=jnp.float32)
    # __init__ sets weight=ones(C), bias=zeros(C); perturb so the affine path
    # is actually exercised.
    weight = jnp.ones((C,), jnp.float32) + 0.1 * jax.random.normal(kw, (C,), jnp.float32)
    bias = 0.1 * jax.random.normal(kb, (C,), jnp.float32)

    # 1) FF-RAFT style NCHW usage (to_3d -> LN -> to_4d), fused kernel.
    out = jax.block_until_ready(withbias_layernorm_nchw(x, weight, bias))
    ref = jnp.transpose(
        _ref_layernorm_lastdim(jnp.transpose(x, (0, 2, 3, 1)), weight, bias), (0, 3, 1, 2))
    assert out.shape == x.shape and out.dtype == x.dtype
    assert jnp.allclose(out, ref, atol=1e-4, rtol=1e-5), "NCHW path mismatch"

    # 2) Ragged spatial extent (H*W not a multiple of 128) -> masked edge block.
    xr = jax.random.normal(kx2, (B, C, 9, 13), dtype=jnp.float32)
    outr = jax.block_until_ready(withbias_layernorm_nchw(xr, weight, bias))
    refr = jnp.transpose(
        _ref_layernorm_lastdim(jnp.transpose(xr, (0, 2, 3, 1)), weight, bias), (0, 3, 1, 2))
    assert jnp.allclose(outr, refr, atol=1e-4, rtol=1e-5), "ragged NCHW path mismatch"

    # 3) bf16 in/out on the fused path (f32 accumulation inside the kernel).
    xb = jax.random.normal(kx3, (B, C, H, W), dtype=jnp.bfloat16)
    wb = weight.astype(jnp.bfloat16)
    bb = bias.astype(jnp.bfloat16)
    outb = jax.block_until_ready(withbias_layernorm_nchw(xb, wb, bb))
    refb = jnp.transpose(
        _ref_layernorm_lastdim(jnp.transpose(xb.astype(jnp.float32), (0, 2, 3, 1)),
                               wb.astype(jnp.float32), bb.astype(jnp.float32)),
        (0, 3, 1, 2))
    assert outb.dtype == jnp.bfloat16
    assert jnp.allclose(outb.astype(jnp.float32), refb, atol=4e-2, rtol=2e-2), \
        "bf16 NCHW path mismatch"

    # 4) Generic last-dim path, lane-packed variant (rows*C % 128 == 0).
    xg = jax.random.normal(kx4, (2, 8, 33, C), dtype=jnp.float32)   # rows=528
    outg = jax.block_until_ready(withbias_layernorm(xg, weight, bias))
    refg = _ref_layernorm_lastdim(xg, weight, bias)
    assert outg.shape == xg.shape and outg.dtype == xg.dtype
    assert jnp.allclose(outg, refg, atol=3e-3, rtol=1e-3), "packed last-dim path mismatch"

    # 5) Generic last-dim path, fallback (rows*C % 128 != 0 -> masked edge block).
    xs = jax.random.normal(kx5, (2, 7, 33, C), dtype=jnp.float32)   # rows=462
    outs = jax.block_until_ready(withbias_layernorm(xs, weight, bias))
    refs = _ref_layernorm_lastdim(xs, weight, bias)
    assert jnp.allclose(outs, refs, atol=1e-4, rtol=1e-5), "last-dim fallback mismatch"

    print("KERNEL_OK")
</pallas_src>

<mosaic_0001>
module attributes {stable_mosaic.version = 11 : i64} {
  func.func @_ln_channels_kernel(%arg0: i32, %arg1: i32, %arg2: memref<1x32x128xf32, #tpu.memory_space<vmem>>, %arg3: memref<32x1xf32, #tpu.memory_space<vmem>>, %arg4: memref<32x1xf32, #tpu.memory_space<vmem>>, %arg5: memref<1x32x128xf32, #tpu.memory_space<vmem>>) attributes {dimension_semantics = [#tpu.dimension_semantics<parallel>, #tpu.dimension_semantics<parallel>], iteration_bounds = array<i64: 2, 2>, scalar_prefetch = 0 : i64, scratch_operands = 0 : i64, tpu.core_type = #tpu.core_type<tc>, window_params = [{transform_indices = @transform_0, window_bounds = array<i64: 1, 32, 128>}, {pipeline_mode = #tpu.pipeline_mode<synchronous>, transform_indices = @transform_1, window_bounds = array<i64: 32, 1>}, {pipeline_mode = #tpu.pipeline_mode<synchronous>, transform_indices = @transform_2, window_bounds = array<i64: 32, 1>}, {transform_indices = @transform_3, window_bounds = array<i64: 1, 32, 128>}]} {
    %c0 = arith.constant 0 : index
    %c0_0 = arith.constant 0 : index
    %c0_1 = arith.constant 0 : index
    %0 = vector.load %arg2[%c0, %c0_0, %c0_1] : memref<1x32x128xf32, #tpu.memory_space<vmem>>, vector<1x32x128xf32>
    %1 = vector.shape_cast %0 : vector<1x32x128xf32> to vector<32x128xf32>
    %cst = arith.constant dense<0.000000e+00> : vector<128xf32>
    %2 = vector.multi_reduction <add>, %1, %cst [0] : vector<32x128xf32> to vector<128xf32>
    %3 = vector.shape_cast %2 : vector<128xf32> to vector<1x128xf32>
    %cst_2 = arith.constant 3.125000e-02 : f32
    %4 = vector.broadcast %cst_2 : f32 to vector<1x128xf32>
    %5 = arith.mulf %3, %4 : vector<1x128xf32>
    %6 = arith.mulf %1, %1 : vector<32x128xf32>
    %cst_3 = arith.constant dense<0.000000e+00> : vector<128xf32>
    %7 = vector.multi_reduction <add>, %6, %cst_3 [0] : vector<32x128xf32> to vector<128xf32>
    %8 = vector.shape_cast %7 : vector<128xf32> to vector<1x128xf32>
    %cst_4 = arith.constant 3.125000e-02 : f32
    %9 = vector.broadcast %cst_4 : f32 to vector<1x128xf32>
    %10 = arith.mulf %8, %9 : vector<1x128xf32>
    %11 = arith.mulf %5, %5 : vector<1x128xf32>
    %12 = arith.subf %10, %11 : vector<1x128xf32>
    %cst_5 = arith.constant 0.000000e+00 : f32
    %13 = vector.broadcast %cst_5 : f32 to vector<1x128xf32>
    %14 = arith.maximumf %12, %13 : vector<1x128xf32>
    %cst_6 = arith.constant 9.99999974E-6 : f32
    %15 = vector.broadcast %cst_6 : f32 to vector<1x128xf32>
    %16 = arith.addf %14, %15 : vector<1x128xf32>
    %17 = math.rsqrt %16 : vector<1x128xf32>
    %c0_7 = arith.constant 0 : index
    %c0_8 = arith.constant 0 : index
    %18 = vector.load %arg3[%c0_7, %c0_8] : memref<32x1xf32, #tpu.memory_space<vmem>>, vector<32x1xf32>
    %c0_9 = arith.constant 0 : index
    %c0_10 = arith.constant 0 : index
    %19 = vector.load %arg4[%c0_9, %c0_10] : memref<32x1xf32, #tpu.memory_space<vmem>>, vector<32x1xf32>
    %20 = vector.broadcast %5 : vector<1x128xf32> to vector<32x128xf32>
    %21 = arith.subf %1, %20 : vector<32x128xf32>
    %22 = vector.broadcast %17 : vector<1x128xf32> to vector<32x128xf32>
    %23 = arith.mulf %21, %22 : vector<32x128xf32>
    %24 = vector.broadcast %18 : vector<32x1xf32> to vector<32x128xf32>
    %25 = arith.mulf %23, %24 : vector<32x128xf32>
    %26 = vector.broadcast %19 : vector<32x1xf32> to vector<32x128xf32>
    %27 = arith.addf %25, %26 : vector<32x128xf32>
    %c0_11 = arith.constant 0 : index
    %c0_12 = arith.constant 0 : index
    %c0_13 = arith.constant 0 : index
    %28 = vector.load %arg5[%c0_11, %c0_12, %c0_13] : memref<1x32x128xf32, #tpu.memory_space<vmem>>, vector<1x32x128xf32>
    %29 = vector.shape_cast %28 : vector<1x32x128xf32> to vector<32x128xf32>
    %30 = vector.shape_cast %27 : vector<32x128xf32> to vector<1x32x128xf32>
    tpu.vector_store %arg5[%c0_11, %c0_12, %c0_13], %30 {strides = array<i32>} : memref<1x32x128xf32, #tpu.memory_space<vmem>>, vector<1x32x128xf32>,
    return
  }
  func.func @transform_0(%arg0: i32, %arg1: i32) -> (i32, i32, i32) {
    %c0_i32 = arith.constant 0 : i32
    %c0_i32_0 = arith.constant 0 : i32
    return %arg0, %c0_i32, %arg1 : i32, i32, i32
  }
  func.func @transform_1(%arg0: i32, %arg1: i32) -> (i32, i32) {
    %c0_i32 = arith.constant 0 : i32
    %c0_i32_0 = arith.constant 0 : i32
    %c0_i32_1 = arith.constant 0 : i32
    return %c0_i32, %c0_i32_0 : i32, i32
  }
  func.func @transform_2(%arg0: i32, %arg1: i32) -> (i32, i32) {
    %c0_i32 = arith.constant 0 : i32
    %c0_i32_0 = arith.constant 0 : i32
    %c0_i32_1 = arith.constant 0 : i32
    return %c0_i32, %c0_i32_0 : i32, i32
  }
  func.func @transform_3(%arg0: i32, %arg1: i32) -> (i32, i32, i32) {
    %c0_i32 = arith.constant 0 : i32
    %c0_i32_0 = arith.constant 0 : i32
    return %arg0, %c0_i32, %arg1 : i32, i32, i32
  }
}

</mosaic_0001>

<llo_original>
// kernel: tpu_custom_call.1
$region0: #{tpu_custom_call.1}
  #allocation0 [shape = 'u32[]', space=smem, size = 0x4, offset = 0x4, fixed_abs, tag = 'smem constant byte address 0x4 - core index']
  #allocation1 [shape = 'u32[72,128]{1,0:T(1,128)}', space=vmem, size = 0x9000, scoped, tag = 'internal scratch']
  %s0 = inlined_call_operand.hbm [shape: f32[2,32,256], index: 0, kind: input, shape index: {}]
  %s1 = inlined_call_operand.vmem [shape: f32[32,1], index: 1, kind: input, shape index: {}]
  %s2 = inlined_call_operand.vmem [shape: f32[32,1], index: 2, kind: input, shape index: {}]
  %s3 = inlined_call_operand.hbm [shape: f32[2,32,256], index: 3, kind: output, shape index: {}]
  %s4 = sld [smem:[#allocation0]]
  $region49: #{tpu_custom_call.1} parent=0
    _
  %s6 = ssub.s32 1, %s4
  %s7 = scalar_select 0, %s6, %s4
  $region1: #{tpu_custom_call.1} parent=0
    #allocation2 [shape = 'u8[32768]{0}', space=vmem, size = 0x8000, scoped, tag = 'input window, operand 0']
    #allocation3 [shape = 's32[2]{0}', space=sflag, size = 0x8, scoped, tag = 'scoped memory for tpu_custom_call.1']
    #allocation4 [shape = 's32[2]{0}', space=sflag, size = 0x8, scoped, tag = 'scoped memory for tpu_custom_call.1']
    #allocation5 [shape = 'u8[32768]{0}', space=vmem, size = 0x8000, scoped, tag = 'output window, operand 0']
    %8 = vsyncpa [#allocation3], 0
    %s9 = scalar_lea.sflag [#allocation3], 1
    %10 = vsyncpa %s9, 0
    %11 = vsyncpa [#allocation4], 0
    %s12 = scalar_lea.sflag [#allocation4], 1
    %13 = vsyncpa %s12, 0
    loop: start=0, step=1, limit=6
    $region2: #{tpu_custom_call.1} parent=1 // loop_pre_header
      _
    $region3: #{tpu_custom_call.1} parent=1 // loop_header
      %s15 = sphi 0, %s19
      %p16 = scmp.ge.s32.totalorder %s15, 6
      %s22 = sphi 0, %s34
      %s23 = sphi 0, %s30
      %s24 = sphi 0, %s22
      %s25 = sphi 0, %s23
      %s26 = sphi 0, %s24
      %s27 = sphi 0, %s25
      %s39 = sphi 0, %s41
      %s42 = sphi 0, %s39
      %s43 = sphi 0, %s42
      %s59 = sphi 0, %s43
      %s63 = sphi 0, %s63
      %s65 = sphi 0, %s63
      %s66 = sphi 0, %s65
      %s80 = sphi 0, %s66
      %s84 = sphi 0, %s84
      %s86 = sphi 0, %s84
      %s87 = sphi 0, %s86
      %s101 = sphi 0, %s87
      %s109 = sphi 0, %s111
      %s112 = sphi 0, %s109
      %s113 = sphi 0, %s112
      %s129 = sphi 0, %s113
    $region4: #{tpu_custom_call.1} parent=1 // loop_header_branch
      %18 = sbr.rel (%p16) target = $region8
    $region5: #{tpu_custom_call.1} parent=1 // loop_body
      %s20 = ssub.s32 %s15, 1
      %s21 = ssub.s32 %s15, 2
      %s28 = sadd.s32 1, %s23
      %p29 = scmp.ge.s32.totalorder %s28, 2
      %s30 = scalar_select %p29, 0, %s28
      %s31 = sadd.s32 1, %s22
      %s32 = scalar_select %p29, %s31, %s22
      %p33 = scmp.ge.s32.totalorder %s32, 2
      %s34 = scalar_select %p33, 0, %s32
      %s35 = ssub.s32 %s22, %s34
      %s36 = ssub.s32 %s23, %s30
      %s37 = sor.u32 %s35, %s36
      %p38 = scmp.eq.s32.totalorder %s37, 0
      %s40 = sadd.s32 %s39, 1
      %s41 = scalar_select %p38, %s39, %s40
      %p44 = pneg %p38
      %p45 = scmp.eq.s32.totalorder %s15, 3
      %p46 = por %p44, %p45
      %p47 = scmp.ne.s32.totalorder %s39, %s42
      %p48 = scmp.eq.s32.totalorder %s15, 0
      %p49 = por %p47, %p48
      %p50 = scmp.ne.s32.totalorder %s39, %s42
      %p51 = scmp.eq.s32.totalorder %s20, 3
      %p52 = por %p50, %p51
      %p53 = scmp.ne.s32.totalorder %s42, %s43
      %p54 = scmp.eq.s32.totalorder %s20, 0
      %p55 = por %p53, %p54
      %p56 = scmp.ne.s32.totalorder %s42, %s43
      %p57 = scmp.eq.s32.totalorder %s21, 3
      %p58 = por %p56, %p57
      %p60 = scmp.ne.s32.totalorder %s43, %s59
      %p61 = scmp.eq.s32.totalorder %s21, 0
      %p62 = por %p60, %p61
      %s64 = sadd.s32 %s63, 1
      %p67 = scmp.eq.s32.totalorder %s15, 3
      %p68 = scmp.ne.s32.totalorder %s63, %s65
      %p69 = scmp.eq.s32.totalorder %s15, 0
      %p70 = por %p68, %p69
      %p71 = scmp.ne.s32.totalorder %s63, %s65
      %p72 = scmp.eq.s32.totalorder %s20, 3
      %p73 = por %p71, %p72
      %p74 = scmp.ne.s32.totalorder %s65, %s66
      %p75 = scmp.eq.s32.totalorder %s20, 0
      %p76 = por %p74, %p75
      %p77 = scmp.ne.s32.totalorder %s65, %s66
      %p78 = scmp.eq.s32.totalorder %s21, 3
      %p79 = por %p77, %p78
      %p81 = scmp.ne.s32.totalorder %s66, %s80
      %p82 = scmp.eq.s32.totalorder %s21, 0
      %p83 = por %p81, %p82
      %s85 = sadd.s32 %s84, 1
      %p88 = scmp.eq.s32.totalorder %s15, 3
      %p89 = scmp.ne.s32.totalorder %s84, %s86
      %p90 = scmp.eq.s32.totalorder %s15, 0
      %p91 = por %p89, %p90
      %p92 = scmp.ne.s32.totalorder %s84, %s86
      %p93 = scmp.eq.s32.totalorder %s20, 3
      %p94 = por %p92, %p93
      %p95 = scmp.ne.s32.totalorder %s86, %s87
      %p96 = scmp.eq.s32.totalorder %s20, 0
      %p97 = por %p95, %p96
      %p98 = scmp.ne.s32.totalorder %s86, %s87
      %p99 = scmp.eq.s32.totalorder %s21, 3
      %p100 = por %p98, %p99
      %p102 = scmp.ne.s32.totalorder %s87, %s101
      %p103 = scmp.eq.s32.totalorder %s21, 0
      %p104 = por %p102, %p103
      %s105 = ssub.s32 %s22, %s34
      %s106 = ssub.s32 %s23, %s30
      %s107 = sor.u32 %s105, %s106
      %p108 = scmp.eq.s32.totalorder %s107, 0
      %s110 = sadd.s32 %s109, 1
      %s111 = scalar_select %p108, %s109, %s110
      %p114 = pneg %p108
      %p115 = scmp.eq.s32.totalorder %s15, 3
      %p116 = por %p114, %p115
      %p117 = scmp.ne.s32.totalorder %s109, %s112
      %p118 = scmp.eq.s32.totalorder %s15, 0
      %p119 = por %p117, %p118
      %p120 = scmp.ne.s32.totalorder %s109, %s112
      %p121 = scmp.eq.s32.totalorder %s20, 3
      %p122 = por %p120, %p121
      %p123 = scmp.ne.s32.totalorder %s112, %s113
      %p124 = scmp.eq.s32.totalorder %s20, 0
      %p125 = por %p123, %p124
      %p126 = scmp.ne.s32.totalorder %s112, %s113
      %p127 = scmp.eq.s32.totalorder %s21, 3
      %p128 = por %p126, %p127
      %p130 = scmp.ne.s32.totalorder %s113, %s129
      %p131 = scmp.eq.s32.totalorder %s21, 0
      %p132 = por %p130, %p131
      %p133 = scmp.le.s32.totalorder 1, %s15
      %p134 = scmp.lt.s32.totalorder %s15, 5
      %p135 = pnand %p133, %p134
      %p136 = pneg %p135
      // Predicated region
      $region9: #{tpu_custom_call.1} parent=5 // pred_check
        _
      $region10: #{tpu_custom_call.1} parent=5 // pred_check_branch
        %138 = sbr.rel (%p135) target = $region12
      $region11: #{tpu_custom_call.1} parent=5 // pred_region
        %s139 = ssub.s32 %s15, 1
        // Predicated region
        $region13: #{tpu_custom_call.1} parent=11 // pred_check
          %p140 = pneg %p76
        $region14: #{tpu_custom_call.1} parent=11 // pred_check_branch
          %142 = sbr.rel (%p140) target = $region16
        $region15: #{tpu_custom_call.1} parent=11 // pred_region
          _
        $region16: #{tpu_custom_call.1} parent=11 // pred_fallthru
          _
        // Predicated region
        $region17: #{tpu_custom_call.1} parent=11 // pred_check
          %p143 = pneg %p97
        $region18: #{tpu_custom_call.1} parent=11 // pred_check_branch
          %145 = sbr.rel (%p143) target = $region20
        $region19: #{tpu_custom_call.1} parent=11 // pred_region
          _
        $region20: #{tpu_custom_call.1} parent=11 // pred_fallthru
          _
      $region12: #{tpu_custom_call.1} parent=5 // pred_fallthru
        _
      %p146 = scmp.lt.s32.totalorder %s15, 4
      // Predicated region
      $region21: #{tpu_custom_call.1} parent=5 // pred_check
        %p147 = pneg %p146
      $region22: #{tpu_custom_call.1} parent=5 // pred_check_branch
        %149 = sbr.rel (%p147) target = $region24
      $region23: #{tpu_custom_call.1} parent=5 // pred_region
        // Predicated region
        $region25: #{tpu_custom_call.1} parent=23 // pred_check
          %p150 = pneg %p49
        $region26: #{tpu_custom_call.1} parent=23 // pred_check_branch
          %152 = sbr.rel (%p150) target = $region28
        $region27: #{tpu_custom_call.1} parent=23 // pred_region
          %s153 = sand.u32 %s39, 1
          %s154 = scalar_lea.sflag [#allocation3], %s153
          %s155 = sand.u32 %s39, 1
          %s156 = smul.addr %s155, 32
          %s157 = scalar_lea.vmem [#allocation2], %s156
          %159 = vsyncadd %s154, 0
          %s160 = smul.addr %s22, 8
          %s161 = sadd.s32 %s23, %s160
          %s162 = smul.addr %s161, 8
          %s163 = scalar_lea.hbm %s0, %s162
          %s164 = sshll.u32 %s163, 4
          %s165 = int_to_ptr.hbm [resolvable:$true] %s164
          %s166 = sshll.u32 %s157, 4
          %s167 = int_to_ptr.vmem [resolvable:$true] %s166
          %172 = dma.hbm_to_vmem [thread:$0]  %s165, 512, %s167, %s154, 256, 128, 8
        $region28: #{tpu_custom_call.1} parent=23 // pred_fallthru
          _
      $region24: #{tpu_custom_call.1} parent=5 // pred_fallthru
        _
      %p173 = scmp.le.s32.totalorder 1, %s15
      %p174 = scmp.lt.s32.totalorder %s15, 5
      %p175 = pnand %p173, %p174
      %p176 = pneg %p175
      // Predicated region
      $region29: #{tpu_custom_call.1} parent=5 // pred_check
        _
      $region30: #{tpu_custom_call.1} parent=5 // pred_check_branch
        %178 = sbr.rel (%p175) target = $region32
      $region31: #{tpu_custom_call.1} parent=5 // pred_region
        %s179 = ssub.s32 %s15, 1
        %s180 = sand.u32 %s42, 1
        %s181 = scalar_lea.sflag [#allocation3], %s180
        %s182 = sand.u32 %s42, 1
        %s183 = smul.addr %s182, 32
        %s184 = scalar_lea.vmem [#allocation2], %s183
        // Predicated region
        $region33: #{tpu_custom_call.1} parent=31 // pred_check
          %p185 = pneg %p55
        $region34: #{tpu_custom_call.1} parent=31 // pred_check_branch
          %187 = sbr.rel (%p185) target = $region36
        $region35: #{tpu_custom_call.1} parent=31 // pred_region
          %189 = dma.done %s181, 512
        $region36: #{tpu_custom_call.1} parent=31 // pred_fallthru
          _
        %s190 = sand.u32 %s42, 1
        %s191 = scalar_lea.sflag [#allocation3], %s190
        %s192 = sand.u32 %s42, 1
        %s193 = smul.addr %s192, 32
        %s194 = scalar_lea.vmem [#allocation2], %s193
        %p195 = pneg %p55
        %p196 = pneg %p52
        %p197 = pneg %p76
        %p198 = pneg %p73
        %p199 = pneg %p97
        %p200 = pneg %p94
        %p201 = pneg %p125
        %p202 = pneg %p122
        %s203 = sand.u32 %s112, 1
        %s204 = scalar_lea.sflag [#allocation4], %s203
        %s205 = sand.u32 %s112, 1
        %s206 = smul.addr %s205, 32
        %s207 = scalar_lea.vmem [#allocation5], %s206
        %v208 = vld [vmem:[%s184] sm:$0xff]
        %v209 = vld [vmem:[%s184 + $0x8] sm:$0xff]
        %v210 = vld [vmem:[%s184 + $0x10] sm:$0xff]
        %v211 = vld [vmem:[%s184 + $0x18] sm:$0xff]
        %v212 = vadd.f32 %v208, %v209
        %v213 = vadd.f32 %v212, %v210
        %v214 = vadd.f32 %v213, %v211
        %v215 = vrot.slane %v214, 4
        %v216 = vadd.f32 %v214, %v215
        %v217 = vrot.slane %v216, 2
        %v218 = vadd.f32 %v216, %v217
        %v219 = vrot.slane %v218, 1
        %v220 = vadd.f32 %v218, %v219
        %v221 = vmul.f32 %v220, 0.03125
        %v222 = vmul.f32 %v208, %v208
        %v223 = vmul.f32 %v209, %v209
        %v224 = vmul.f32 %v210, %v210
        %v225 = vmul.f32 %v211, %v211
        %v226 = vadd.f32 %v222, %v223
        %v227 = vadd.f32 %v226, %v224
        %v228 = vadd.f32 %v227, %v225
        %v229 = vrot.slane %v228, 4
        %v230 = vadd.f32 %v228, %v229
        %v231 = vrot.slane %v230, 2
        %v232 = vadd.f32 %v230, %v231
        %v233 = vrot.slane %v232, 1
        %v234 = vadd.f32 %v232, %v233
        %v235 = vmul.f32 %v234, 0.03125
        %v236 = vmul.f32 %v221, %v221
        %v237 = vsub.f32 %v235, %v236
        %v238 = vmax.f32 %v237, 0.0
        %v239 = vadd.f32 %v238, 1e-05
        %v240 = vrsqrt.pop %v239
        %v241 = vmul.f32 %v240, %v239
        %v242 = vmul.f32 %v241, %v240
        %v243 = vmul.f32 0.5, %v242
        %v244 = vsub.f32 1.5, %v243
        %v245 = vmul.f32 %v240, %v244
        %vm246 = vweird.f32 %v239
        %vm247 = vweird.f32 %v240
        %vm248 = vmor %vm246, %vm247
        %v249 = vsel %vm248, %v240, %v245
        %v250 = vld [vmem:[%s1] sm:$0xff]
        %v251 = vld [vmem:[%s1 + $0x8] sm:$0xff]
        %v252 = vld [vmem:[%s1 + $0x10] sm:$0xff]
        %v253 = vld [vmem:[%s1 + $0x18] sm:$0xff]
        %v254 = vld [vmem:[%s2] sm:$0xff]
        %v255 = vld [vmem:[%s2 + $0x8] sm:$0xff]
        %v256 = vld [vmem:[%s2 + $0x10] sm:$0xff]
        %v257 = vld [vmem:[%s2 + $0x18] sm:$0xff]
        %v258 = vsub.f32 %v208, %v221
        %v259 = vsub.f32 %v209, %v221
        %v260 = vsub.f32 %v210, %v221
        %v261 = vsub.f32 %v211, %v221
        %v262 = vmul.f32 %v258, %v249
        %v263 = vmul.f32 %v259, %v249
        %v264 = vmul.f32 %v260, %v249
        %v265 = vmul.f32 %v261, %v249
        %267 = vset.pattern.permute.xlu0 0
        %268 = vperm.xlu0 %267, %v250
        %v269 = vpop.permute.xlu0 %268
        %272 = vset.pattern.permute.xlu0 0
        %273 = vperm.xlu0 %272, %v251
        %v274 = vpop.permute.xlu0 %273
        %277 = vset.pattern.permute.xlu0 0
        %278 = vperm.xlu0 %277, %v252
        %v279 = vpop.permute.xlu0 %278
        %282 = vset.pattern.permute.xlu0 0
        %283 = vperm.xlu0 %282, %v253
        %v284 = vpop.permute.xlu0 %283
        %v286 = vmul.f32 %v262, %v269
        %v287 = vmul.f32 %v263, %v274
        %v288 = vmul.f32 %v264, %v279
        %v289 = vmul.f32 %v265, %v284
        %291 = vset.pattern.permute.xlu0 0
        %292 = vperm.xlu0 %291, %v254
        %v293 = vpop.permute.xlu0 %292
        %296 = vset.pattern.permute.xlu0 0
        %297 = vperm.xlu0 %296, %v255
        %v298 = vpop.permute.xlu0 %297
        %301 = vset.pattern.permute.xlu0 0
        %302 = vperm.xlu0 %301, %v256
        %v303 = vpop.permute.xlu0 %302
        %306 = vset.pattern.permute.xlu0 0
        %307 = vperm.xlu0 %306, %v257
        %v308 = vpop.permute.xlu0 %307
        %v310 = vadd.f32 %v286, %v293
        %v311 = vadd.f32 %v287, %v298
        %v312 = vadd.f32 %v288, %v303
        %v313 = vadd.f32 %v289, %v308
        %314 = vst [vmem:[%s207] sm:$0xff] %v310
        %315 = vst [vmem:[%s207 + $0x8] sm:$0xff] %v311
        %316 = vst [vmem:[%s207 + $0x10] sm:$0xff] %v312
        %317 = vst [vmem:[%s207 + $0x18] sm:$0xff] %v313
        %s318 = sand.u32 %s112, 1
        %s319 = scalar_lea.sflag [#allocation4], %s318
        %s320 = sand.u32 %s112, 1
        %s321 = smul.addr %s320, 32
        %s322 = scalar_lea.vmem [#allocation5], %s321
        // Predicated region
        $region37: #{tpu_custom_call.1} parent=31 // pred_check
          %p323 = pneg %p122
        $region38: #{tpu_custom_call.1} parent=31 // pred_check_branch
          %325 = sbr.rel (%p323) target = $region40
        $region39: #{tpu_custom_call.1} parent=31 // pred_region
          %327 = vsyncadd %s319, 0
          %s328 = smul.addr %s24, 8
          %s329 = sadd.s32 %s25, %s328
          %s330 = smul.addr %s329, 8
          %s331 = scalar_lea.hbm %s3, %s330
          %s332 = sshll.u32 %s322, 4
          %s333 = int_to_ptr.vmem [resolvable:$true] %s332
          %s334 = sshll.u32 %s331, 4
          %s335 = int_to_ptr.hbm [resolvable:$true] %s334
          %340 = dma.vmem_to_hbm [thread:$0]  %s333, 512, %s335, %s319, 128, 256, 8
        $region40: #{tpu_custom_call.1} parent=31 // pred_fallthru
          _
      $region32: #{tpu_custom_call.1} parent=5 // pred_fallthru
        _
      %p341 = scmp.le.s32.totalorder 2, %s15
      // Predicated region
      $region41: #{tpu_custom_call.1} parent=5 // pred_check
        %p342 = pneg %p341
      $region42: #{tpu_custom_call.1} parent=5 // pred_check_branch
        %344 = sbr.rel (%p342) target = $region44
      $region43: #{tpu_custom_call.1} parent=5 // pred_region
        %s345 = ssub.s32 %s15, 2
        // Predicated region
        $region45: #{tpu_custom_call.1} parent=43 // pred_check
          %p346 = pneg %p128
        $region46: #{tpu_custom_call.1} parent=43 // pred_check_branch
          %348 = sbr.rel (%p346) target = $region48
        $region47: #{tpu_custom_call.1} parent=43 // pred_region
          %s349 = sand.u32 %s113, 1
          %s350 = scalar_lea.sflag [#allocation4], %s349
          %s351 = sand.u32 %s113, 1
          %s352 = smul.addr %s351, 32
          %s353 = scalar_lea.vmem [#allocation5], %s352
          %355 = dma.done %s350, 512
        $region48: #{tpu_custom_call.1} parent=43 // pred_fallthru
          _
      $region44: #{tpu_custom_call.1} parent=5 // pred_fallthru
        _
    $region6: #{tpu_custom_call.1} parent=1 // loop_footer
      %s19 = sadd.s32 1, %s15
    $region7: #{tpu_custom_call.1} parent=1 // loop_footer_branch
      %14 = sbr.rel target = $region3
    $region8: #{tpu_custom_call.1} parent=1 // loop_exit
      _
    %356 = vsyncpa [#allocation3], 1
    %s357 = scalar_lea.sflag [#allocation3], 1
    %358 = vsyncpa %s357, 1
    %359 = vsyncpa [#allocation4], 1
    %s360 = scalar_lea.sflag [#allocation4], 1
    %361 = vsyncpa %s360, 1

</llo_original>
